<compile_context>
chip_gen: v7x
topology: tpu7x:2x2x1
jax: 0.10.0
libtpu: 0.0.40
codegen_flags: <defaults>
</compile_context>

<pallas_src>
import functools

import jax
import jax.numpy as jnp
from jax.experimental import pallas as pl
from jax.experimental.pallas import tpu as pltpu

ALPHA = 0.25     # focal loss alpha
GAMMA = 2.0      # focal loss gamma (special-cased as a square below)
SMOOTH = 1.0     # dice smooth
EPS = 1e-7       # clamp for log()

# ~1M elements per block: preds 4 MiB + target 8 MiB (f32), double-buffered ~24 MiB.
DEFAULT_BLOCK_ELEMS = 1024 * 1024


def _loss_kernel(preds_ref, tgt_ref, out_ref, *, binary_mask):
    """Accumulating reduction over the (batch, row-tile) grid.

    preds_ref: (r, C)        probabilities (input dtype; upcast here)
    tgt_ref:   (2, r, C)     channel 0 = mask, channel 1 = distance map
    out_ref:   (4, 8, C) f32 per-batch partial sums, revisited across the row-tile axis:
               [0] sum(focal)  [1] sum(p*dist)  [2] sum(p*mask)  [3] sum(p + mask)
    """
    j = pl.program_id(1)

    @pl.when(j == 0)
    def _init():
        out_ref[...] = jnp.zeros_like(out_ref)

    p = preds_ref[...].astype(jnp.float32)     # (r, C)
    t = tgt_ref[0].astype(jnp.float32)         # (r, C) mask
    d = tgt_ref[1].astype(jnp.float32)         # (r, C) distance map

    pc = jnp.clip(p, EPS, 1.0 - EPS)
    if binary_mask:
        # Exact for t in {0,1}: one log per element, one (1-q)^2 square on the VPU.
        is_pos = t > 0.5
        q = jnp.where(is_pos, pc, 1.0 - pc)
        w = jnp.where(is_pos, ALPHA, 1.0 - ALPHA)
        omq = 1.0 - q
        focal = -w * (omq * omq) * jnp.log(q)
    else:
        # Soft-label capable multiplicative form (2 logs per element).
        omp = 1.0 - pc
        focal = -(ALPHA * t * (omp * omp) * jnp.log(pc)
                  + (1.0 - ALPHA) * (1.0 - t) * (pc * pc) * jnp.log(omp))

    r, c = p.shape

    def rowsum(x):
        # (r, C) -> (r//8, 8, C) -> sum over the leading axis: pure VPU adds across
        # vregs (no XLU), leaving a single (8, C) slab to add into the resident output.
        return jnp.sum(x.reshape(r // 8, 8, c), axis=0)

    out_ref[0] += rowsum(focal)
    out_ref[1] += rowsum(p * d)       # boundary term; * 0.5 applied in the epilogue
    out_ref[2] += rowsum(p * t)       # dice intersection
    out_ref[3] += rowsum(p + t)       # dice denominator


def focal_dice_5boundary_loss(preds, target, *, block_elems=DEFAULT_BLOCK_ELEMS,
                              binary_mask=True):
    """preds: (B, H, W) probabilities; target: (B, 2, H, W) [mask, dist_map]."""
    B, H, W = preds.shape
    assert target.shape == (B, 2, H, W)
    HW = H * W
    n_total = B * HW

    preds_f = preds.reshape(B, HW)               # free contiguous reshape (keep dtype)
    target_f = target.reshape(B, 2, HW)          # free contiguous reshape (keep dtype)

    # Pick lane width C (multiple of 128 dividing HW); pad lanes only if needed.
    C = None
    for c in (2048, 1024, 512, 256, 128):
        if HW % c == 0:
            C = c
            break
    if C is None:
        C = 128
        pad = (-HW) % C
        # Zero pads: mask/dist pads are 0; preds pad of 0 hits the clamped-log path and
        # contributes ~1e-21 per element to the focal sum -> negligible (n_total excludes pads).
        preds_f = jnp.pad(preds_f, ((0, 0), (0, pad)))
        target_f = jnp.pad(target_f, ((0, 0), (0, 0), (0, pad)))
    HW_pad = preds_f.shape[-1]
    rows = HW_pad // C

    # Row tile: always a multiple of 8 (full sublane packing); pad rows up to a multiple
    # of r instead of falling back to tiny / odd-divisor blocks.
    cap = max(8, (block_elems // C) // 8 * 8)
    rows8 = ((rows + 7) // 8) * 8
    r = min(cap, rows8)
    rows_final = ((rows + r - 1) // r) * r

    preds_f = preds_f.reshape(B, rows, C)
    target_f = target_f.reshape(B, 2, rows, C)
    if rows_final != rows:
        preds_f = jnp.pad(preds_f, ((0, 0), (0, rows_final - rows), (0, 0)))
        target_f = jnp.pad(target_f, ((0, 0), (0, 0), (0, rows_final - rows), (0, 0)))

    grid = (B, rows_final // r)

    # VMEM budget: double-buffered preds + target blocks + small output block + slack.
    per_step_bytes = (r * C * preds_f.dtype.itemsize
                      + 2 * r * C * target_f.dtype.itemsize)
    vmem_limit = max(32 << 20, 2 * per_step_bytes + 2 * (4 * 8 * C * 4) + (2 << 20))

    kernel = functools.partial(_loss_kernel, binary_mask=binary_mask)
    partials = pl.pallas_call(
        kernel,
        out_shape=jax.ShapeDtypeStruct((B, 4, 8, C), jnp.float32),
        grid_spec=pltpu.PrefetchScalarGridSpec(
            num_scalar_prefetch=0,
            grid=grid,
            in_specs=[
                # preds block: dense (r, C) tile, batch dim squeezed out.
                pl.BlockSpec((None, r, C), lambda b, j: (b, j, 0)),
                # target block: both channels in one (2, r, C) tile -> target is read
                # from HBM exactly once, no strided channel-slice copies in the wrapper.
                pl.BlockSpec((None, 2, r, C), lambda b, j: (b, 0, j, 0)),
            ],
            # Per-batch lane-dense partial sums; block index constant across j -> the
            # (4, 8, C) tile stays resident in VMEM and acts as the accumulator.
            out_specs=pl.BlockSpec((None, 4, 8, C), lambda b, j: (b, 0, 0, 0)),
        ),
        compiler_params=pltpu.CompilerParams(
            # Batch axis is independent (per-batch output blocks) -> usable by both
            # TensorCores on v7x; row-tile axis accumulates -> arbitrary.
            dimension_semantics=("parallel", "arbitrary"),
            vmem_limit_bytes=int(vmem_limit),
        ),
    )(preds_f, target_f)

    # Tiny JAX epilogue: reduce the (B, 4, 8, C) partial sums and combine the three losses.
    sums = jnp.sum(partials, axis=(0, 2, 3))        # (4,)
    n = jnp.float32(n_total)
    focal_mean = sums[0] / n
    boundary_mean = sums[1] / n
    dice = 1.0 - (2.0 * sums[2] + SMOOTH) / (sums[3] + SMOOTH)
    return focal_mean + dice + 0.5 * boundary_mean


def _reference_loss(preds, target):
    """Pure-JAX reference for correctness check."""
    p = preds.astype(jnp.float32)
    mask = target[:, 0].astype(jnp.float32)
    dist = target[:, 1].astype(jnp.float32)

    pc = jnp.clip(p, EPS, 1.0 - EPS)
    focal = -(ALPHA * mask * (1.0 - pc) ** GAMMA * jnp.log(pc)
              + (1.0 - ALPHA) * (1.0 - mask) * pc ** GAMMA * jnp.log(1.0 - pc))
    focal_loss = jnp.mean(focal)

    inter = jnp.sum(p * mask)
    dice_loss = 1.0 - (2.0 * inter + SMOOTH) / (jnp.sum(p) + jnp.sum(mask) + SMOOTH)

    boundary_loss = jnp.mean(p * dist)
    return focal_loss + dice_loss + 0.5 * boundary_loss


if __name__ == "__main__":
    # --- small shape: exercises lane-fallback-free path + row padding (rows=1 -> 8) ---
    key = jax.random.PRNGKey(0)
    k1, k2, k3 = jax.random.split(key, 3)
    B, H, W = 2, 16, 16
    preds = jax.nn.sigmoid(jax.random.normal(k1, (B, H, W), dtype=jnp.float32))
    mask = (jax.random.uniform(k2, (B, H, W)) > 0.5).astype(jnp.float32)
    dist_map = jax.random.normal(k3, (B, H, W), dtype=jnp.float32)
    target = jnp.stack([mask, dist_map], axis=1)          # (B, 2, H, W)

    loss = jax.block_until_ready(focal_dice_5boundary_loss(preds, target))
    ref = _reference_loss(preds, target)
    assert jnp.allclose(loss, ref, rtol=1e-5, atol=1e-5), (loss, ref)

    # --- larger spatial with a small block size to exercise multi-tile accumulation ---
    kk1, kk2, kk3 = jax.random.split(jax.random.PRNGKey(1), 3)
    B2, H2, W2 = 2, 256, 256
    preds2 = jax.nn.sigmoid(jax.random.normal(kk1, (B2, H2, W2), dtype=jnp.float32))
    mask2 = (jax.random.uniform(kk2, (B2, H2, W2)) > 0.5).astype(jnp.float32)
    dist2 = jax.random.normal(kk3, (B2, H2, W2), dtype=jnp.float32)
    target2 = jnp.stack([mask2, dist2], axis=1)
    loss2 = jax.block_until_ready(
        focal_dice_5boundary_loss(preds2, target2, block_elems=16 * 1024))
    ref2 = _reference_loss(preds2, target2)
    assert jnp.allclose(loss2, ref2, rtol=1e-5, atol=1e-5), (loss2, ref2)

    # --- bf16 inputs: in-kernel upcast path (halves HBM traffic vs wrapper astype) ---
    preds3 = preds2.astype(jnp.bfloat16)
    target3 = target2.astype(jnp.bfloat16)
    loss3 = jax.block_until_ready(focal_dice_5boundary_loss(preds3, target3))
    ref3 = _reference_loss(preds3, target3)
    assert jnp.allclose(loss3, ref3, rtol=1e-5, atol=1e-5), (loss3, ref3)

    # --- soft-label (multiplicative focal) path behind the flag ---
    loss4 = jax.block_until_ready(
        focal_dice_5boundary_loss(preds, target, binary_mask=False))
    assert jnp.allclose(loss4, ref, rtol=1e-5, atol=1e-5), (loss4, ref)

    print("KERNEL_OK")
</pallas_src>

<mosaic_0001>
module attributes {stable_mosaic.version = 11 : i64} {
  func.func @_loss_kernel(%arg0: i32, %arg1: i32, %arg2: memref<1x8x256xf32, #tpu.memory_space<vmem>>, %arg3: memref<1x2x8x256xf32, #tpu.memory_space<vmem>>, %arg4: memref<1x4x8x256xf32, #tpu.memory_space<vmem>>) attributes {dimension_semantics = [#tpu.dimension_semantics<parallel>, #tpu.dimension_semantics<arbitrary>], iteration_bounds = array<i64: 2, 1>, scalar_prefetch = 0 : i64, scratch_operands = 0 : i64, tpu.core_type = #tpu.core_type<tc>, window_params = [{transform_indices = @transform_0, window_bounds = array<i64: 1, 8, 256>}, {transform_indices = @transform_1, window_bounds = array<i64: 1, 2, 8, 256>}, {transform_indices = @transform_2, window_bounds = array<i64: 1, 4, 8, 256>}]} {
    %c0_i32 = arith.constant 0 : i32
    %0 = arith.cmpi eq, %arg1, %c0_i32 : i32
    %1 = arith.extui %0 : i1 to i32
    %c0_i32_0 = arith.constant 0 : i32
    %2 = arith.cmpi ne, %1, %c0_i32_0 : i32
    scf.if %2 {
      %cst_51 = arith.constant 0.000000e+00 : f32
      %64 = vector.broadcast %cst_51 : f32 to vector<4x8x256xf32>
      %c0_52 = arith.constant 0 : index
      %c0_53 = arith.constant 0 : index
      %c0_54 = arith.constant 0 : index
      %c0_55 = arith.constant 0 : index
      %65 = vector.load %arg4[%c0_52, %c0_53, %c0_54, %c0_55] : memref<1x4x8x256xf32, #tpu.memory_space<vmem>>, vector<1x4x8x256xf32>
      %66 = vector.shape_cast %65 : vector<1x4x8x256xf32> to vector<4x8x256xf32>
      %67 = vector.shape_cast %64 : vector<4x8x256xf32> to vector<1x4x8x256xf32>
      tpu.vector_store %arg4[%c0_52, %c0_53, %c0_54, %c0_55], %67 {strides = array<i32>} : memref<1x4x8x256xf32, #tpu.memory_space<vmem>>, vector<1x4x8x256xf32>,
    } else {
    }
    %c0 = arith.constant 0 : index
    %c0_1 = arith.constant 0 : index
    %c0_2 = arith.constant 0 : index
    %3 = vector.load %arg2[%c0, %c0_1, %c0_2] : memref<1x8x256xf32, #tpu.memory_space<vmem>>, vector<1x8x256xf32>
    %4 = vector.shape_cast %3 : vector<1x8x256xf32> to vector<8x256xf32>
    %c0_3 = arith.constant 0 : index
    %c0_4 = arith.constant 0 : index
    %c0_5 = arith.constant 0 : index
    %c0_6 = arith.constant 0 : index
    %5 = vector.load %arg3[%c0_3, %c0_4, %c0_5, %c0_6] : memref<1x2x8x256xf32, #tpu.memory_space<vmem>>, vector<1x1x8x256xf32>
    %6 = vector.shape_cast %5 : vector<1x1x8x256xf32> to vector<8x256xf32>
    %c0_7 = arith.constant 0 : index
    %c1 = arith.constant 1 : index
    %c0_8 = arith.constant 0 : index
    %c0_9 = arith.constant 0 : index
    %7 = vector.load %arg3[%c0_7, %c1, %c0_8, %c0_9] : memref<1x2x8x256xf32, #tpu.memory_space<vmem>>, vector<1x1x8x256xf32>
    %8 = vector.shape_cast %7 : vector<1x1x8x256xf32> to vector<8x256xf32>
    %cst = arith.constant 1.000000e-07 : f32
    %cst_10 = arith.constant 0.99999988 : f32
    %9 = vector.broadcast %cst : f32 to vector<8x256xf32>
    %10 = arith.maximumf %9, %4 : vector<8x256xf32>
    %11 = vector.broadcast %cst_10 : f32 to vector<8x256xf32>
    %12 = arith.minimumf %11, %10 : vector<8x256xf32>
    %cst_11 = arith.constant 5.000000e-01 : f32
    %13 = vector.broadcast %cst_11 : f32 to vector<8x256xf32>
    %14 = arith.cmpf ogt, %6, %13 : vector<8x256xf32>
    %cst_12 = arith.constant 1.000000e+00 : f32
    %15 = vector.broadcast %cst_12 : f32 to vector<8x256xf32>
    %16 = arith.subf %15, %12 : vector<8x256xf32>
    %17 = arith.select %14, %12, %16 : vector<8x256xi1>, vector<8x256xf32>
    %cst_13 = arith.constant 2.500000e-01 : f32
    %cst_14 = arith.constant 7.500000e-01 : f32
    %18 = vector.broadcast %cst_13 : f32 to vector<8x256xf32>
    %19 = vector.broadcast %cst_14 : f32 to vector<8x256xf32>
    %20 = arith.select %14, %18, %19 : vector<8x256xi1>, vector<8x256xf32>
    %cst_15 = arith.constant 1.000000e+00 : f32
    %21 = vector.broadcast %cst_15 : f32 to vector<8x256xf32>
    %22 = arith.subf %21, %17 : vector<8x256xf32>
    %cst_16 = arith.constant 0.000000e+00 : f32
    %23 = vector.broadcast %cst_16 : f32 to vector<8x256xf32>
    %24 = arith.subf %23, %20 : vector<8x256xf32>
    %25 = arith.mulf %22, %22 : vector<8x256xf32>
    %26 = arith.mulf %24, %25 : vector<8x256xf32>
    %27 = math.log %17 : vector<8x256xf32>
    %28 = arith.mulf %26, %27 : vector<8x256xf32>
    %c0_17 = arith.constant 0 : index
    %c0_18 = arith.constant 0 : index
    %c0_19 = arith.constant 0 : index
    %c0_20 = arith.constant 0 : index
    %29 = vector.load %arg4[%c0_17, %c0_18, %c0_19, %c0_20] : memref<1x4x8x256xf32, #tpu.memory_space<vmem>>, vector<1x1x8x256xf32>
    %30 = vector.shape_cast %29 : vector<1x1x8x256xf32> to vector<8x256xf32>
    %31 = vector.shape_cast %28 : vector<8x256xf32> to vector<1x8x256xf32>
    %cst_21 = arith.constant dense<0.000000e+00> : vector<8x256xf32>
    %32 = vector.multi_reduction <add>, %31, %cst_21 [0] : vector<1x8x256xf32> to vector<8x256xf32>
    %33 = arith.addf %30, %32 : vector<8x256xf32>
    %c0_22 = arith.constant 0 : index
    %c0_23 = arith.constant 0 : index
    %c0_24 = arith.constant 0 : index
    %c0_25 = arith.constant 0 : index
    %34 = vector.load %arg4[%c0_22, %c0_23, %c0_24, %c0_25] : memref<1x4x8x256xf32, #tpu.memory_space<vmem>>, vector<1x1x8x256xf32>
    %35 = vector.shape_cast %34 : vector<1x1x8x256xf32> to vector<8x256xf32>
    %36 = vector.shape_cast %33 : vector<8x256xf32> to vector<1x1x8x256xf32>
    tpu.vector_store %arg4[%c0_22, %c0_23, %c0_24, %c0_25], %36 {strides = array<i32>} : memref<1x4x8x256xf32, #tpu.memory_space<vmem>>, vector<1x1x8x256xf32>,
    %c0_26 = arith.constant 0 : index
    %c1_27 = arith.constant 1 : index
    %c0_28 = arith.constant 0 : index
    %c0_29 = arith.constant 0 : index
    %37 = vector.load %arg4[%c0_26, %c1_27, %c0_28, %c0_29] : memref<1x4x8x256xf32, #tpu.memory_space<vmem>>, vector<1x1x8x256xf32>
    %38 = vector.shape_cast %37 : vector<1x1x8x256xf32> to vector<8x256xf32>
    %39 = arith.mulf %4, %8 : vector<8x256xf32>
    %40 = vector.shape_cast %39 : vector<8x256xf32> to vector<1x8x256xf32>
    %cst_30 = arith.constant dense<0.000000e+00> : vector<8x256xf32>
    %41 = vector.multi_reduction <add>, %40, %cst_30 [0] : vector<1x8x256xf32> to vector<8x256xf32>
    %42 = arith.addf %38, %41 : vector<8x256xf32>
    %c0_31 = arith.constant 0 : index
    %c1_32 = arith.constant 1 : index
    %c0_33 = arith.constant 0 : index
    %c0_34 = arith.constant 0 : index
    %43 = vector.load %arg4[%c0_31, %c1_32, %c0_33, %c0_34] : memref<1x4x8x256xf32, #tpu.memory_space<vmem>>, vector<1x1x8x256xf32>
    %44 = vector.shape_cast %43 : vector<1x1x8x256xf32> to vector<8x256xf32>
    %45 = vector.shape_cast %42 : vector<8x256xf32> to vector<1x1x8x256xf32>
    tpu.vector_store %arg4[%c0_31, %c1_32, %c0_33, %c0_34], %45 {strides = array<i32>} : memref<1x4x8x256xf32, #tpu.memory_space<vmem>>, vector<1x1x8x256xf32>,
    %c0_35 = arith.constant 0 : index
    %c2 = arith.constant 2 : index
    %c0_36 = arith.constant 0 : index
    %c0_37 = arith.constant 0 : index
    %46 = vector.load %arg4[%c0_35, %c2, %c0_36, %c0_37] : memref<1x4x8x256xf32, #tpu.memory_space<vmem>>, vector<1x1x8x256xf32>
    %47 = vector.shape_cast %46 : vector<1x1x8x256xf32> to vector<8x256xf32>
    %48 = arith.mulf %4, %6 : vector<8x256xf32>
    %49 = vector.shape_cast %48 : vector<8x256xf32> to vector<1x8x256xf32>
    %cst_38 = arith.constant dense<0.000000e+00> : vector<8x256xf32>
    %50 = vector.multi_reduction <add>, %49, %cst_38 [0] : vector<1x8x256xf32> to vector<8x256xf32>
    %51 = arith.addf %47, %50 : vector<8x256xf32>
    %c0_39 = arith.constant 0 : index
    %c2_40 = arith.constant 2 : index
    %c0_41 = arith.constant 0 : index
    %c0_42 = arith.constant 0 : index
    %52 = vector.load %arg4[%c0_39, %c2_40, %c0_41, %c0_42] : memref<1x4x8x256xf32, #tpu.memory_space<vmem>>, vector<1x1x8x256xf32>
    %53 = vector.shape_cast %52 : vector<1x1x8x256xf32> to vector<8x256xf32>
    %54 = vector.shape_cast %51 : vector<8x256xf32> to vector<1x1x8x256xf32>
    tpu.vector_store %arg4[%c0_39, %c2_40, %c0_41, %c0_42], %54 {strides = array<i32>} : memref<1x4x8x256xf32, #tpu.memory_space<vmem>>, vector<1x1x8x256xf32>,
    %c0_43 = arith.constant 0 : index
    %c3 = arith.constant 3 : index
    %c0_44 = arith.constant 0 : index
    %c0_45 = arith.constant 0 : index
    %55 = vector.load %arg4[%c0_43, %c3, %c0_44, %c0_45] : memref<1x4x8x256xf32, #tpu.memory_space<vmem>>, vector<1x1x8x256xf32>
    %56 = vector.shape_cast %55 : vector<1x1x8x256xf32> to vector<8x256xf32>
    %57 = arith.addf %4, %6 : vector<8x256xf32>
    %58 = vector.shape_cast %57 : vector<8x256xf32> to vector<1x8x256xf32>
    %cst_46 = arith.constant dense<0.000000e+00> : vector<8x256xf32>
    %59 = vector.multi_reduction <add>, %58, %cst_46 [0] : vector<1x8x256xf32> to vector<8x256xf32>
    %60 = arith.addf %56, %59 : vector<8x256xf32>
    %c0_47 = arith.constant 0 : index
    %c3_48 = arith.constant 3 : index
    %c0_49 = arith.constant 0 : index
    %c0_50 = arith.constant 0 : index
    %61 = vector.load %arg4[%c0_47, %c3_48, %c0_49, %c0_50] : memref<1x4x8x256xf32, #tpu.memory_space<vmem>>, vector<1x1x8x256xf32>
    %62 = vector.shape_cast %61 : vector<1x1x8x256xf32> to vector<8x256xf32>
    %63 = vector.shape_cast %60 : vector<8x256xf32> to vector<1x1x8x256xf32>
    tpu.vector_store %arg4[%c0_47, %c3_48, %c0_49, %c0_50], %63 {strides = array<i32>} : memref<1x4x8x256xf32, #tpu.memory_space<vmem>>, vector<1x1x8x256xf32>,
    return
  }
  func.func @transform_0(%arg0: i32, %arg1: i32) -> (i32, i32, i32) {
    %c0_i32 = arith.constant 0 : i32
    %c0_i32_0 = arith.constant 0 : i32
    return %arg0, %arg1, %c0_i32 : i32, i32, i32
  }
  func.func @transform_1(%arg0: i32, %arg1: i32) -> (i32, i32, i32, i32) {
    %c0_i32 = arith.constant 0 : i32
    %c0_i32_0 = arith.constant 0 : i32
    %c0_i32_1 = arith.constant 0 : i32
    return %arg0, %c0_i32, %arg1, %c0_i32_0 : i32, i32, i32, i32
  }
  func.func @transform_2(%arg0: i32, %arg1: i32) -> (i32, i32, i32, i32) {
    %c0_i32 = arith.constant 0 : i32
    %c0_i32_0 = arith.constant 0 : i32
    %c0_i32_1 = arith.constant 0 : i32
    %c0_i32_2 = arith.constant 0 : i32
    return %arg0, %c0_i32, %c0_i32_0, %c0_i32_1 : i32, i32, i32, i32
  }
}

</mosaic_0001>

<llo_original>
// kernel: tpu_custom_call.1
$region0: #{tpu_custom_call.1}
  #allocation0 [shape = 'u32[]', space=smem, size = 0x4, offset = 0x4, fixed_abs, tag = 'smem constant byte address 0x4 - core index']
  #allocation1 [shape = 'u32[144,128]{1,0:T(1,128)}', space=vmem, size = 0x12000, scoped, tag = 'internal scratch']
  %s0 = inlined_call_operand.hbm [shape: f32[2,8,256], index: 0, kind: input, shape index: {}]
  %s1 = inlined_call_operand.hbm [shape: f32[2,2,8,256], index: 1, kind: input, shape index: {}]
  %s2 = inlined_call_operand.hbm [shape: f32[2,4,8,256], index: 2, kind: output, shape index: {}]
  %s3 = sld [smem:[#allocation0]]
  $region53: #{tpu_custom_call.1} parent=0
    _
  %s5 = ssub.s32 1, %s3
  %s6 = scalar_select 0, %s5, %s3
  $region1: #{tpu_custom_call.1} parent=0
    #allocation2 [shape = 'u8[16384]{0}', space=vmem, size = 0x4000, scoped, tag = 'input window, operand 0']
    #allocation3 [shape = 's32[2]{0}', space=sflag, size = 0x8, scoped, tag = 'scoped memory for tpu_custom_call.1']
    #allocation4 [shape = 's32[2]{0}', space=sflag, size = 0x8, scoped, tag = 'scoped memory for tpu_custom_call.1']
    #allocation5 [shape = 'u8[32768]{0}', space=vmem, size = 0x8000, scoped, tag = 'input window, operand 1']
    #allocation6 [shape = 's32[2]{0}', space=sflag, size = 0x8, scoped, tag = 'scoped memory for tpu_custom_call.1']
    #allocation7 [shape = 'u8[65536]{0}', space=vmem, size = 0x10000, scoped, tag = 'output window, operand 0']
    %7 = vsyncpa [#allocation3], 0
    %s8 = scalar_lea.sflag [#allocation3], 1
    %9 = vsyncpa %s8, 0
    %10 = vsyncpa [#allocation6], 0
    %s11 = scalar_lea.sflag [#allocation6], 1
    %12 = vsyncpa %s11, 0
    %13 = vsyncpa [#allocation4], 0
    %s14 = scalar_lea.sflag [#allocation4], 1
    %15 = vsyncpa %s14, 0
    loop: start=0, step=1, limit=4
    $region2: #{tpu_custom_call.1} parent=1 // loop_pre_header
      _
    $region3: #{tpu_custom_call.1} parent=1 // loop_header
      %s17 = sphi 0, %s21
      %p18 = scmp.ge.s32.totalorder %s17, 4
      %s24 = sphi 0, %s36
      %s25 = sphi 0, %s32
      %s26 = sphi 0, %s24
      %s27 = sphi 0, %s25
      %s28 = sphi 0, %s26
      %s29 = sphi 0, %s27
      %s41 = sphi 0, %s43
      %s44 = sphi 0, %s41
      %s45 = sphi 0, %s44
      %s61 = sphi 0, %s45
      %s69 = sphi 0, %s71
      %s72 = sphi 0, %s69
      %s73 = sphi 0, %s72
      %s89 = sphi 0, %s73
      %s95 = sphi 0, %s97
      %s98 = sphi 0, %s95
      %s99 = sphi 0, %s98
      %s115 = sphi 0, %s99
    $region4: #{tpu_custom_call.1} parent=1 // loop_header_branch
      %20 = sbr.rel (%p18) target = $region8
    $region5: #{tpu_custom_call.1} parent=1 // loop_body
      %s22 = ssub.s32 %s17, 1
      %s23 = ssub.s32 %s17, 2
      %s30 = sadd.s32 1, %s25
      %p31 = scmp.ge.s32.totalorder %s30, 1
      %s32 = scalar_select %p31, 0, %s30
      %s33 = sadd.s32 1, %s24
      %s34 = scalar_select %p31, %s33, %s24
      %p35 = scmp.ge.s32.totalorder %s34, 2
      %s36 = scalar_select %p35, 0, %s34
      %s37 = ssub.s32 %s24, %s36
      %s38 = ssub.s32 %s25, %s32
      %s39 = sor.u32 %s37, %s38
      %p40 = scmp.eq.s32.totalorder %s39, 0
      %s42 = sadd.s32 %s41, 1
      %s43 = scalar_select %p40, %s41, %s42
      %p46 = pneg %p40
      %p47 = scmp.eq.s32.totalorder %s17, 1
      %p48 = por %p46, %p47
      %p49 = scmp.ne.s32.totalorder %s41, %s44
      %p50 = scmp.eq.s32.totalorder %s17, 0
      %p51 = por %p49, %p50
      %p52 = scmp.ne.s32.totalorder %s41, %s44
      %p53 = scmp.eq.s32.totalorder %s22, 1
      %p54 = por %p52, %p53
      %p55 = scmp.ne.s32.totalorder %s44, %s45
      %p56 = scmp.eq.s32.totalorder %s22, 0
      %p57 = por %p55, %p56
      %p58 = scmp.ne.s32.totalorder %s44, %s45
      %p59 = scmp.eq.s32.totalorder %s23, 1
      %p60 = por %p58, %p59
      %p62 = scmp.ne.s32.totalorder %s45, %s61
      %p63 = scmp.eq.s32.totalorder %s23, 0
      %p64 = por %p62, %p63
      %s65 = ssub.s32 %s24, %s36
      %s66 = ssub.s32 %s25, %s32
      %s67 = sor.u32 %s65, %s66
      %p68 = scmp.eq.s32.totalorder %s67, 0
      %s70 = sadd.s32 %s69, 1
      %s71 = scalar_select %p68, %s69, %s70
      %p74 = pneg %p68
      %p75 = scmp.eq.s32.totalorder %s17, 1
      %p76 = por %p74, %p75
      %p77 = scmp.ne.s32.totalorder %s69, %s72
      %p78 = scmp.eq.s32.totalorder %s17, 0
      %p79 = por %p77, %p78
      %p80 = scmp.ne.s32.totalorder %s69, %s72
      %p81 = scmp.eq.s32.totalorder %s22, 1
      %p82 = por %p80, %p81
      %p83 = scmp.ne.s32.totalorder %s72, %s73
      %p84 = scmp.eq.s32.totalorder %s22, 0
      %p85 = por %p83, %p84
      %p86 = scmp.ne.s32.totalorder %s72, %s73
      %p87 = scmp.eq.s32.totalorder %s23, 1
      %p88 = por %p86, %p87
      %p90 = scmp.ne.s32.totalorder %s73, %s89
      %p91 = scmp.eq.s32.totalorder %s23, 0
      %p92 = por %p90, %p91
      %s93 = ssub.s32 %s24, %s36
      %p94 = scmp.eq.s32.totalorder %s93, 0
      %s96 = sadd.s32 %s95, 1
      %s97 = scalar_select %p94, %s95, %s96
      %p100 = pneg %p94
      %p101 = scmp.eq.s32.totalorder %s17, 1
      %p102 = por %p100, %p101
      %p103 = scmp.ne.s32.totalorder %s95, %s98
      %p104 = scmp.eq.s32.totalorder %s17, 0
      %p105 = por %p103, %p104
      %p106 = scmp.ne.s32.totalorder %s95, %s98
      %p107 = scmp.eq.s32.totalorder %s22, 1
      %p108 = por %p106, %p107
      %p109 = scmp.ne.s32.totalorder %s98, %s99
      %p110 = scmp.eq.s32.totalorder %s22, 0
      %p111 = por %p109, %p110
      %p112 = scmp.ne.s32.totalorder %s98, %s99
      %p113 = scmp.eq.s32.totalorder %s23, 1
      %p114 = por %p112, %p113
      %p116 = scmp.ne.s32.totalorder %s99, %s115
      %p117 = scmp.eq.s32.totalorder %s23, 0
      %p118 = por %p116, %p117
      %p119 = scmp.le.s32.totalorder 1, %s17
      %p120 = scmp.lt.s32.totalorder %s17, 3
      %p121 = pnand %p119, %p120
      %p122 = pneg %p121
      // Predicated region
      $region9: #{tpu_custom_call.1} parent=5 // pred_check
        _
      $region10: #{tpu_custom_call.1} parent=5 // pred_check_branch
        %124 = sbr.rel (%p121) target = $region12
      $region11: #{tpu_custom_call.1} parent=5 // pred_region
        %s125 = ssub.s32 %s17, 1
      $region12: #{tpu_custom_call.1} parent=5 // pred_fallthru
        _
      %p126 = scmp.lt.s32.totalorder %s17, 2
      // Predicated region
      $region13: #{tpu_custom_call.1} parent=5 // pred_check
        %p127 = pneg %p126
      $region14: #{tpu_custom_call.1} parent=5 // pred_check_branch
        %129 = sbr.rel (%p127) target = $region16
      $region15: #{tpu_custom_call.1} parent=5 // pred_region
        // Predicated region
        $region17: #{tpu_custom_call.1} parent=15 // pred_check
          %p130 = pneg %p51
        $region18: #{tpu_custom_call.1} parent=15 // pred_check_branch
          %132 = sbr.rel (%p130) target = $region20
        $region19: #{tpu_custom_call.1} parent=15 // pred_region
          %s133 = sand.u32 %s41, 1
          %s134 = scalar_lea.sflag [#allocation3], %s133
          %s135 = sand.u32 %s41, 1
          %s136 = smul.addr %s135, 16
          %s137 = scalar_lea.vmem [#allocation2], %s136
          %s139 = ssub.s32 256, 256
          %140 = vsyncadd %s134, %s139
          %s141 = smul.addr %s25, 2
          %s142 = smul.addr %s24, 2
          %s143 = sadd.s32 %s141, %s142
          %s144 = smul.addr %s143, 128
          %s145 = scalar_lea.hbm %s0, %s144
          %s147 = sshll.u32 %s137, 4
          %s148 = int_to_ptr.vmem [resolvable:$true] %s147
          %150 = dma.hbm_to_vmem [thread:$0]  %s145, 256, %s148, %s134
        $region20: #{tpu_custom_call.1} parent=15 // pred_fallthru
          _
        // Predicated region
        $region21: #{tpu_custom_call.1} parent=15 // pred_check
          %p151 = pneg %p79
        $region22: #{tpu_custom_call.1} parent=15 // pred_check_branch
          %153 = sbr.rel (%p151) target = $region24
        $region23: #{tpu_custom_call.1} parent=15 // pred_region
          %s154 = sand.u32 %s69, 1
          %s155 = scalar_lea.sflag [#allocation6], %s154
          %s156 = sand.u32 %s69, 1
          %s157 = smul.addr %s156, 32
          %s158 = scalar_lea.vmem [#allocation5], %s157
          %s160 = ssub.s32 512, 512
          %161 = vsyncadd %s155, %s160
          %s162 = smul.addr %s25, 2
          %s163 = smul.addr %s24, 4
          %s164 = sadd.s32 %s162, %s163
          %s165 = smul.addr %s164, 128
          %s166 = scalar_lea.hbm %s1, %s165
          %s167 = sshll.u32 %s158, 4
          %s168 = int_to_ptr.vmem [resolvable:$true] %s167
          %173 = dma.hbm_to_vmem [thread:$0]  %s166, 512, %s168, %s155, 256, 256, 16
        $region24: #{tpu_custom_call.1} parent=15 // pred_fallthru
          _
      $region16: #{tpu_custom_call.1} parent=5 // pred_fallthru
        _
      %p174 = scmp.le.s32.totalorder 1, %s17
      %p175 = scmp.lt.s32.totalorder %s17, 3
      %p176 = pnand %p174, %p175
      %p177 = pneg %p176
      // Predicated region
      $region25: #{tpu_custom_call.1} parent=5 // pred_check
        _
      $region26: #{tpu_custom_call.1} parent=5 // pred_check_branch
        %179 = sbr.rel (%p176) target = $region28
      $region27: #{tpu_custom_call.1} parent=5 // pred_region
        %s180 = ssub.s32 %s17, 1
        %s181 = sand.u32 %s44, 1
        %s182 = scalar_lea.sflag [#allocation3], %s181
        %s183 = sand.u32 %s44, 1
        %s184 = smul.addr %s183, 16
        %s185 = scalar_lea.vmem [#allocation2], %s184
        // Predicated region
        $region29: #{tpu_custom_call.1} parent=27 // pred_check
          %p186 = pneg %p57
        $region30: #{tpu_custom_call.1} parent=27 // pred_check_branch
          %188 = sbr.rel (%p186) target = $region32
        $region31: #{tpu_custom_call.1} parent=27 // pred_region
          %189 = dma.done %s182, 256
        $region32: #{tpu_custom_call.1} parent=27 // pred_fallthru
          _
        %s190 = sand.u32 %s72, 1
        %s191 = scalar_lea.sflag [#allocation6], %s190
        %s192 = sand.u32 %s72, 1
        %s193 = smul.addr %s192, 32
        %s194 = scalar_lea.vmem [#allocation5], %s193
        // Predicated region
        $region33: #{tpu_custom_call.1} parent=27 // pred_check
          %p195 = pneg %p85
        $region34: #{tpu_custom_call.1} parent=27 // pred_check_branch
          %197 = sbr.rel (%p195) target = $region36
        $region35: #{tpu_custom_call.1} parent=27 // pred_region
          %198 = dma.done %s191, 512
        $region36: #{tpu_custom_call.1} parent=27 // pred_fallthru
          _
        %s199 = sand.u32 %s44, 1
        %s200 = scalar_lea.sflag [#allocation3], %s199
        %s201 = sand.u32 %s44, 1
        %s202 = smul.addr %s201, 16
        %s203 = scalar_lea.vmem [#allocation2], %s202
        %p204 = pneg %p57
        %p205 = pneg %p54
        %s206 = sand.u32 %s72, 1
        %s207 = scalar_lea.sflag [#allocation6], %s206
        %s208 = sand.u32 %s72, 1
        %s209 = smul.addr %s208, 32
        %s210 = scalar_lea.vmem [#allocation5], %s209
        %p211 = pneg %p85
        %p212 = pneg %p82
        %p213 = pneg %p111
        %p214 = pneg %p108
        %s215 = sand.u32 %s98, 1
        %s216 = scalar_lea.sflag [#allocation4], %s215
        %s217 = sand.u32 %s98, 1
        %s218 = smul.addr %s217, 64
        %s219 = scalar_lea.vmem [#allocation7], %s218
        %p220 = scmp.eq.s32.totalorder %s27, 0
        // Predicated region
        $region37: #{tpu_custom_call.1} parent=27 // pred_check
          %p221 = pneg %p220
        $region38: #{tpu_custom_call.1} parent=27 // pred_check_branch
          %223 = sbr.rel (%p221) target = $region40
        $region39: #{tpu_custom_call.1} parent=27 // pred_region
          %224 = vst [vmem:[%s219] sm:$0xff] 0.0
          %225 = vst [vmem:[%s219 + $0x8] sm:$0xff] 0.0
          %226 = vst [vmem:[%s219 + $0x10] sm:$0xff] 0.0
          %227 = vst [vmem:[%s219 + $0x18] sm:$0xff] 0.0
          %228 = vst [vmem:[%s219 + $0x20] sm:$0xff] 0.0
          %229 = vst [vmem:[%s219 + $0x28] sm:$0xff] 0.0
          %230 = vst [vmem:[%s219 + $0x30] sm:$0xff] 0.0
          %231 = vst [vmem:[%s219 + $0x38] sm:$0xff] 0.0
        $region40: #{tpu_custom_call.1} parent=27 // pred_fallthru
          _
        %v232 = vld [vmem:[%s185] sm:$0xff]
        %v233 = vld [vmem:[%s185 + $0x8] sm:$0xff]
        %v234 = vld [vmem:[%s194] sm:$0xff]
        %v235 = vld [vmem:[%s194 + $0x8] sm:$0xff]
        %s236 = scalar_lea.vmem %s194, 16 [#allocation5]
        %v237 = vld [vmem:[%s236] sm:$0xff]
        %v238 = vld [vmem:[%s236 + $0x8] sm:$0xff]
        %v239 = vmax.f32 %v232, 1e-07
        %v240 = vmax.f32 %v233, 1e-07
        %v241 = vmin.f32 %v239, 0.9999999
        %v242 = vmin.f32 %v240, 0.9999999
        %vm243 = vcmp.gt.f32.partialorder %v234, 0.5
        %vm244 = vcmp.gt.f32.partialorder %v235, 0.5
        %v245 = vsub.f32 1.0, %v241
        %v246 = vsub.f32 1.0, %v242
        %v247 = vsel %vm243, %v241, %v245
        %v248 = vsel %vm244, %v242, %v246
        %v249 = vsel %vm243, 0.25, 0.75
        %v250 = vsel %vm244, 0.25, 0.75
        %v251 = vsub.f32 1.0, %v247
        %v252 = vsub.f32 1.0, %v248
        %v253 = vsub.f32 0.0, %v249
        %v254 = vsub.f32 0.0, %v250
        %v255 = vmul.f32 %v251, %v251
        %v256 = vmul.f32 %v252, %v252
        %v257 = vmul.f32 %v253, %v255
        %v258 = vmul.f32 %v254, %v256
        %v259 = vlog2.pop %v247
        %v260 = vmul.f32 %v259, 0.6931472
        %v261 = vlog2.pop %v248
        %v262 = vmul.f32 %v261, 0.6931472
        %v263 = vmul.f32 %v257, %v260
        %v264 = vmul.f32 %v258, %v262
        %v265 = vld [vmem:[%s219] sm:$0xff]
        %v266 = vld [vmem:[%s219 + $0x8] sm:$0xff]
        %v267 = vadd.f32 %v263, 0.0
        %v268 = vadd.f32 %v264, 0.0
        %v269 = vadd.f32 %v265, %v267
        %v270 = vadd.f32 %v266, %v268
        %271 = vst [vmem:[%s219] sm:$0xff] %v269
        %272 = vst [vmem:[%s219 + $0x8] sm:$0xff] %v270
        %s273 = scalar_lea.vmem %s219, 16 [#allocation7]
        %v274 = vld [vmem:[%s273] sm:$0xff]
        %v275 = vld [vmem:[%s273 + $0x8] sm:$0xff]
        %v276 = vmul.f32 %v232, %v237
        %v277 = vmul.f32 %v233, %v238
        %v278 = vadd.f32 %v276, 0.0
        %v279 = vadd.f32 %v277, 0.0
        %v280 = vadd.f32 %v274, %v278
        %v281 = vadd.f32 %v275, %v279
        %282 = vst [vmem:[%s273] sm:$0xff] %v280
        %283 = vst [vmem:[%s273 + $0x8] sm:$0xff] %v281
        %s284 = scalar_lea.vmem %s219, 32 [#allocation7]
        %v285 = vld [vmem:[%s284] sm:$0xff]
        %v286 = vld [vmem:[%s284 + $0x8] sm:$0xff]
        %v287 = vmul.f32 %v232, %v234
        %v288 = vmul.f32 %v233, %v235
        %v289 = vadd.f32 %v287, 0.0
        %v290 = vadd.f32 %v288, 0.0
        %v291 = vadd.f32 %v285, %v289
        %v292 = vadd.f32 %v286, %v290
        %293 = vst [vmem:[%s284] sm:$0xff] %v291
        %294 = vst [vmem:[%s284 + $0x8] sm:$0xff] %v292
        %s295 = scalar_lea.vmem %s219, 48 [#allocation7]
        %v296 = vld [vmem:[%s295] sm:$0xff]
        %v297 = vld [vmem:[%s295 + $0x8] sm:$0xff]
        %v298 = vadd.f32 %v232, %v234
        %v299 = vadd.f32 %v233, %v235
        %v300 = vadd.f32 %v298, 0.0
        %v301 = vadd.f32 %v299, 0.0
        %v302 = vadd.f32 %v296, %v300
        %v303 = vadd.f32 %v297, %v301
        %304 = vst [vmem:[%s295] sm:$0xff] %v302
        %305 = vst [vmem:[%s295 + $0x8] sm:$0xff] %v303
        %s306 = sand.u32 %s98, 1
        %s307 = scalar_lea.sflag [#allocation4], %s306
        %s308 = sand.u32 %s98, 1
        %s309 = smul.addr %s308, 64
        %s310 = scalar_lea.vmem [#allocation7], %s309
        // Predicated region
        $region41: #{tpu_custom_call.1} parent=27 // pred_check
          %p311 = pneg %p108
        $region42: #{tpu_custom_call.1} parent=27 // pred_check_branch
          %313 = sbr.rel (%p311) target = $region44
        $region43: #{tpu_custom_call.1} parent=27 // pred_region
          %s315 = ssub.s32 1024, 1024
          %316 = vsyncadd %s307, %s315
          %s317 = smul.addr %s26, 8
          %s318 = smul.addr %s317, 128
          %s319 = scalar_lea.hbm %s2, %s318
          %s320 = sshll.u32 %s310, 4
          %s321 = int_to_ptr.vmem [resolvable:$true] %s320
          %326 = dma.vmem_to_hbm [thread:$0]  %s321, 1024, %s319, %s307, 256, 256, 16
        $region44: #{tpu_custom_call.1} parent=27 // pred_fallthru
          _
      $region28: #{tpu_custom_call.1} parent=5 // pred_fallthru
        _
      %p327 = scmp.le.s32.totalorder 2, %s17
      // Predicated region
      $region45: #{tpu_custom_call.1} parent=5 // pred_check
        %p328 = pneg %p327
      $region46: #{tpu_custom_call.1} parent=5 // pred_check_branch
        %330 = sbr.rel (%p328) target = $region48
      $region47: #{tpu_custom_call.1} parent=5 // pred_region
        %s331 = ssub.s32 %s17, 2
        // Predicated region
        $region49: #{tpu_custom_call.1} parent=47 // pred_check
          %p332 = pneg %p114
        $region50: #{tpu_custom_call.1} parent=47 // pred_check_branch
          %334 = sbr.rel (%p332) target = $region52
        $region51: #{tpu_custom_call.1} parent=47 // pred_region
          %s335 = sand.u32 %s99, 1
          %s336 = scalar_lea.sflag [#allocation4], %s335
          %s337 = sand.u32 %s99, 1
          %s338 = smul.addr %s337, 64
          %s339 = scalar_lea.vmem [#allocation7], %s338
          %340 = dma.done %s336, 1024
        $region52: #{tpu_custom_call.1} parent=47 // pred_fallthru
          _
      $region48: #{tpu_custom_call.1} parent=5 // pred_fallthru
        _
    $region6: #{tpu_custom_call.1} parent=1 // loop_footer
      %s21 = sadd.s32 1, %s17
    $region7: #{tpu_custom_call.1} parent=1 // loop_footer_branch
      %16 = sbr.rel target = $region3
    $region8: #{tpu_custom_call.1} parent=1 // loop_exit
      _
    %341 = vsyncpa [#allocation3], 1
    %s342 = scalar_lea.sflag [#allocation3], 1
    %343 = vsyncpa %s342, 1
    %344 = vsyncpa [#allocation6], 1
    %s345 = scalar_lea.sflag [#allocation6], 1
    %346 = vsyncpa %s345, 1
    %347 = vsyncpa [#allocation4], 1
    %s348 = scalar_lea.sflag [#allocation4], 1
    %349 = vsyncpa %s348, 1

</llo_original>
